<compile_context>
chip_gen: v7x
topology: tpu7x:2x2x1
jax: 0.10.0
libtpu: 0.0.40
codegen_flags: <defaults>
</compile_context>

<pallas_src>
import functools

import jax
import jax.numpy as jnp
from jax.experimental import pallas as pl
from jax.experimental.pallas import tpu as pltpu

NEG_SLOPE = 0.5


def _conv1x1_leaky_kernel(x_ref, w_ref, b_ref, o_ref):
    # x_ref: (1, C_in, TM) f32   w_ref: (C_out, C_in) f32
    # b_ref: (C_out, 1)   f32    o_ref: (1, C_out, TM) f32
    x = x_ref[0].astype(jnp.bfloat16)          # in-kernel cast (free, VPU slack)
    w = w_ref[...].astype(jnp.bfloat16)        # tiny, resident
    acc = jnp.dot(w, x, preferred_element_type=jnp.float32)   # MXU, f32 acc
    acc = acc + b_ref[...]                     # lane-broadcast bias, f32
    # leaky ReLU with 0 < slope < 1: max(v, slope*v)
    o_ref[0] = jnp.maximum(acc, acc * NEG_SLOPE).astype(o_ref.dtype)


@functools.partial(jax.jit, static_argnames=("tm",))
def conv1x1_pad1_leaky(x_nchw, weight, bias, *, tm=32768):
    """x_nchw: (N, C_in, H, W). weight: (C_out, C_in[,1,1]). bias: (C_out,)."""
    n, c_in, h, w = x_nchw.shape
    if weight.ndim == 4:                       # PyTorch Conv2d weight (O,I,1,1)
        weight = weight.reshape(weight.shape[0], weight.shape[1])
    c_out = weight.shape[0]
    m = h * w

    # Channels-on-sublanes / pixels-on-lanes layout: pure reshape, no cast.
    x3d = x_nchw.reshape(n, c_in, m)

    # Lane-dense M tile. When there is a single image, split M into >= 2
    # parallel tiles so both v7x TensorCores can share the HBM stream.
    m_lanes = pl.cdiv(m, 128) * 128
    if n == 1 and m_lanes >= 256:
        tm_eff = min(tm, pl.cdiv(pl.cdiv(m, 2), 128) * 128)
    else:
        tm_eff = min(tm, m_lanes)
    m_pad = pl.cdiv(m, tm_eff) * tm_eff
    if m_pad != m:
        x3d = jnp.pad(x3d, ((0, 0), (0, 0), (0, m_pad - m)))

    w_k = weight.astype(jnp.float32)                  # (C_out, C_in), resident
    b_k = bias.reshape(c_out, 1).astype(jnp.float32)  # (C_out, 1), resident

    out3d = pl.pallas_call(
        _conv1x1_leaky_kernel,
        out_shape=jax.ShapeDtypeStruct((n, c_out, m_pad), jnp.float32),
        grid_spec=pltpu.PrefetchScalarGridSpec(
            num_scalar_prefetch=0,
            grid=(n, m_pad // tm_eff),
            in_specs=[
                pl.BlockSpec((1, c_in, tm_eff), lambda b, i: (b, 0, i)),
                pl.BlockSpec((c_out, c_in), lambda b, i: (0, 0)),   # resident
                pl.BlockSpec((c_out, 1), lambda b, i: (0, 0)),      # resident
            ],
            out_specs=pl.BlockSpec((1, c_out, tm_eff), lambda b, i: (b, 0, i)),
        ),
        compiler_params=pltpu.CompilerParams(
            dimension_semantics=("parallel", "parallel")),
    )(x3d, w_k, b_k)

    # Interior conv result back to (N, C_out, H, W) -- pure reshape.
    interior = out3d[:, :, :m].reshape(n, c_out, h, w)

    # padding=1 with a 1x1 kernel: every border output pixel equals
    # leaky(bias[c]).  Small-W epilogue; for large lane-dense W this could be
    # written directly from the kernel into the padded layout instead.
    border = jnp.maximum(bias, bias * NEG_SLOPE).astype(jnp.float32)
    out = jnp.broadcast_to(border[None, :, None, None],
                           (n, c_out, h + 2, w + 2))
    return out.at[:, :, 1:h + 1, 1:w + 1].set(interior)


if __name__ == "__main__":
    key = jax.random.PRNGKey(0)
    kx, kw, kb = jax.random.split(key, 3)

    # Small shapes consistent with the module: Conv2d(16 -> 8, 1x1, pad=1).
    N, C_IN, H, W = 1, 16, 16, 16
    C_OUT = 8

    x = jax.random.normal(kx, (N, C_IN, H, W), dtype=jnp.float32)
    weight = jax.random.normal(kw, (C_OUT, C_IN, 1, 1), dtype=jnp.float32) * 0.1
    bias = jax.random.normal(kb, (C_OUT,), dtype=jnp.float32) * 0.1

    out = jax.block_until_ready(conv1x1_pad1_leaky(x, weight, bias))

    # Pure-JAX reference with matching bf16-input / f32-accumulate numerics.
    x_pad = jnp.pad(x.astype(jnp.bfloat16), ((0, 0), (0, 0), (1, 1), (1, 1)))
    w2d = weight.reshape(C_OUT, C_IN).astype(jnp.bfloat16)
    v1 = jnp.einsum("nchw,oc->nohw", x_pad, w2d,
                    preferred_element_type=jnp.float32)
    v1 = v1 + bias[None, :, None, None]
    ref = jnp.where(v1 > 0, v1, v1 * NEG_SLOPE)

    assert out.shape == (N, C_OUT, H + 2, W + 2), out.shape
    assert jnp.allclose(out, ref, atol=1e-4, rtol=1e-4), (
        float(jnp.max(jnp.abs(out - ref))))
    print("KERNEL_OK")
</pallas_src>

<mosaic_0001>
module attributes {stable_mosaic.version = 11 : i64} {
  func.func @_conv1x1_leaky_kernel(%arg0: i32, %arg1: i32, %arg2: memref<1x16x128xf32, #tpu.memory_space<vmem>>, %arg3: memref<8x16xf32, #tpu.memory_space<vmem>>, %arg4: memref<8x1xf32, #tpu.memory_space<vmem>>, %arg5: memref<1x8x128xf32, #tpu.memory_space<vmem>>) attributes {dimension_semantics = [#tpu.dimension_semantics<parallel>, #tpu.dimension_semantics<parallel>], iteration_bounds = array<i64: 1, 2>, scalar_prefetch = 0 : i64, scratch_operands = 0 : i64, tpu.core_type = #tpu.core_type<tc>, window_params = [{transform_indices = @transform_0, window_bounds = array<i64: 1, 16, 128>}, {pipeline_mode = #tpu.pipeline_mode<synchronous>, transform_indices = @transform_1, window_bounds = array<i64: 8, 16>}, {pipeline_mode = #tpu.pipeline_mode<synchronous>, transform_indices = @transform_2, window_bounds = array<i64: 8, 1>}, {transform_indices = @transform_3, window_bounds = array<i64: 1, 8, 128>}]} {
    %c0 = arith.constant 0 : index
    %c0_0 = arith.constant 0 : index
    %c0_1 = arith.constant 0 : index
    %0 = vector.load %arg2[%c0, %c0_0, %c0_1] : memref<1x16x128xf32, #tpu.memory_space<vmem>>, vector<1x16x128xf32>
    %1 = vector.shape_cast %0 : vector<1x16x128xf32> to vector<16x128xf32>
    %2 = arith.truncf %1 : vector<16x128xf32> to vector<16x128xbf16>
    %c0_2 = arith.constant 0 : index
    %c0_3 = arith.constant 0 : index
    %3 = vector.load %arg3[%c0_2, %c0_3] : memref<8x16xf32, #tpu.memory_space<vmem>>, vector<8x16xf32>
    %4 = arith.truncf %3 : vector<8x16xf32> to vector<8x16xbf16>
    %cst = arith.constant dense<0.000000e+00> : vector<8x128xf32>
    %5 = tpu.matmul %4, %2, %cst {dimension_numbers = #tpu.dot_dimension_numbers<[1], [0], [0], [1], [0, 0, 1, 1], [], []>} : vector<8x16xbf16>, vector<16x128xbf16>, vector<8x128xf32> -> vector<8x128xf32>
    %c0_4 = arith.constant 0 : index
    %c0_5 = arith.constant 0 : index
    %6 = vector.load %arg4[%c0_4, %c0_5] : memref<8x1xf32, #tpu.memory_space<vmem>>, vector<8x1xf32>
    %7 = vector.broadcast %6 : vector<8x1xf32> to vector<8x128xf32>
    %8 = arith.addf %5, %7 : vector<8x128xf32>
    %cst_6 = arith.constant 5.000000e-01 : f32
    %9 = vector.broadcast %cst_6 : f32 to vector<8x128xf32>
    %10 = arith.mulf %8, %9 : vector<8x128xf32>
    %11 = arith.maximumf %8, %10 : vector<8x128xf32>
    %c0_7 = arith.constant 0 : index
    %c0_8 = arith.constant 0 : index
    %c0_9 = arith.constant 0 : index
    %12 = vector.load %arg5[%c0_7, %c0_8, %c0_9] : memref<1x8x128xf32, #tpu.memory_space<vmem>>, vector<1x8x128xf32>
    %13 = vector.shape_cast %12 : vector<1x8x128xf32> to vector<8x128xf32>
    %14 = vector.shape_cast %11 : vector<8x128xf32> to vector<1x8x128xf32>
    tpu.vector_store %arg5[%c0_7, %c0_8, %c0_9], %14 {strides = array<i32>} : memref<1x8x128xf32, #tpu.memory_space<vmem>>, vector<1x8x128xf32>,
    return
  }
  func.func @transform_0(%arg0: i32, %arg1: i32) -> (i32, i32, i32) {
    %c0_i32 = arith.constant 0 : i32
    %c0_i32_0 = arith.constant 0 : i32
    return %arg0, %c0_i32, %arg1 : i32, i32, i32
  }
  func.func @transform_1(%arg0: i32, %arg1: i32) -> (i32, i32) {
    %c0_i32 = arith.constant 0 : i32
    %c0_i32_0 = arith.constant 0 : i32
    %c0_i32_1 = arith.constant 0 : i32
    return %c0_i32, %c0_i32_0 : i32, i32
  }
  func.func @transform_2(%arg0: i32, %arg1: i32) -> (i32, i32) {
    %c0_i32 = arith.constant 0 : i32
    %c0_i32_0 = arith.constant 0 : i32
    %c0_i32_1 = arith.constant 0 : i32
    return %c0_i32, %c0_i32_0 : i32, i32
  }
  func.func @transform_3(%arg0: i32, %arg1: i32) -> (i32, i32, i32) {
    %c0_i32 = arith.constant 0 : i32
    %c0_i32_0 = arith.constant 0 : i32
    return %arg0, %c0_i32, %arg1 : i32, i32, i32
  }
}

</mosaic_0001>

<llo_original>
// kernel: conv1x1_pad1_leaky.1
$region0: #{conv1x1_pad1_leaky.1}
  #allocation0 [shape = 'u32[]', space=smem, size = 0x4, offset = 0x4, fixed_abs, tag = 'smem constant byte address 0x4 - core index']
  #allocation1 [shape = 'u32[144,128]{1,0:T(1,128)}', space=vmem, size = 0x12000, scoped, tag = 'internal scratch']
  %s0 = inlined_call_operand.vmem [shape: f32[1,16,256], index: 0, kind: input, shape index: {}]
  %s1 = inlined_call_operand.vmem [shape: f32[8,16], index: 1, kind: input, shape index: {}]
  %s2 = inlined_call_operand.vmem [shape: f32[8,1], index: 2, kind: input, shape index: {}]
  %s3 = inlined_call_operand.vmem [shape: f32[1,8,256], index: 3, kind: output, shape index: {}]
  %s4 = sld [smem:[#allocation0]]
  $region83: #{conv1x1_pad1_leaky.1} parent=0
    _
  %s6 = ssub.s32 1, %s4
  %s7 = scalar_select 0, %s6, %s4
  $region1: #{conv1x1_pad1_leaky.1} parent=0
    #allocation2 [shape = 'u8[16384]{0}', space=vmem, size = 0x4000, scoped, tag = 'input window, operand 0']
    loop: start=0, step=1, limit=4
    $region2: #{conv1x1_pad1_leaky.1} parent=1 // loop_pre_header
      _
    $region3: #{conv1x1_pad1_leaky.1} parent=1 // loop_header
      %s9 = sphi 0, %s13
      %p10 = scmp.ge.s32.totalorder %s9, 4
      %s16 = sphi 0, %s28
      %s17 = sphi 0, %s24
      %s18 = sphi 0, %s16
      %s19 = sphi 0, %s17
      %s20 = sphi 0, %s18
      %s21 = sphi 0, %s19
      %s33 = sphi 0, %s35
      %s36 = sphi 0, %s33
      %s37 = sphi 0, %s36
      %s53 = sphi 0, %s37
      %s57 = sphi 0, %s57
      %s59 = sphi 0, %s57
      %s60 = sphi 0, %s59
      %s74 = sphi 0, %s60
      %s78 = sphi 0, %s78
      %s80 = sphi 0, %s78
      %s81 = sphi 0, %s80
      %s95 = sphi 0, %s81
      %s103 = sphi 0, %s105
      %s106 = sphi 0, %s103
      %s107 = sphi 0, %s106
      %s123 = sphi 0, %s107
    $region4: #{conv1x1_pad1_leaky.1} parent=1 // loop_header_branch
      %12 = sbr.rel (%p10) target = $region8
    $region5: #{conv1x1_pad1_leaky.1} parent=1 // loop_body
      %s14 = ssub.s32 %s9, 1
      %s15 = ssub.s32 %s9, 2
      %s22 = sadd.s32 1, %s17
      %p23 = scmp.ge.s32.totalorder %s22, 2
      %s24 = scalar_select %p23, 0, %s22
      %s25 = sadd.s32 1, %s16
      %s26 = scalar_select %p23, %s25, %s16
      %p27 = scmp.ge.s32.totalorder %s26, 1
      %s28 = scalar_select %p27, 0, %s26
      %s29 = ssub.s32 %s16, %s28
      %s30 = ssub.s32 %s17, %s24
      %s31 = sor.u32 %s29, %s30
      %p32 = scmp.eq.s32.totalorder %s31, 0
      %s34 = sadd.s32 %s33, 1
      %s35 = scalar_select %p32, %s33, %s34
      %p38 = pneg %p32
      %p39 = scmp.eq.s32.totalorder %s9, 1
      %p40 = por %p38, %p39
      %p41 = scmp.ne.s32.totalorder %s33, %s36
      %p42 = scmp.eq.s32.totalorder %s9, 0
      %p43 = por %p41, %p42
      %p44 = scmp.ne.s32.totalorder %s33, %s36
      %p45 = scmp.eq.s32.totalorder %s14, 1
      %p46 = por %p44, %p45
      %p47 = scmp.ne.s32.totalorder %s36, %s37
      %p48 = scmp.eq.s32.totalorder %s14, 0
      %p49 = por %p47, %p48
      %p50 = scmp.ne.s32.totalorder %s36, %s37
      %p51 = scmp.eq.s32.totalorder %s15, 1
      %p52 = por %p50, %p51
      %p54 = scmp.ne.s32.totalorder %s37, %s53
      %p55 = scmp.eq.s32.totalorder %s15, 0
      %p56 = por %p54, %p55
      %s58 = sadd.s32 %s57, 1
      %p61 = scmp.eq.s32.totalorder %s9, 1
      %p62 = scmp.ne.s32.totalorder %s57, %s59
      %p63 = scmp.eq.s32.totalorder %s9, 0
      %p64 = por %p62, %p63
      %p65 = scmp.ne.s32.totalorder %s57, %s59
      %p66 = scmp.eq.s32.totalorder %s14, 1
      %p67 = por %p65, %p66
      %p68 = scmp.ne.s32.totalorder %s59, %s60
      %p69 = scmp.eq.s32.totalorder %s14, 0
      %p70 = por %p68, %p69
      %p71 = scmp.ne.s32.totalorder %s59, %s60
      %p72 = scmp.eq.s32.totalorder %s15, 1
      %p73 = por %p71, %p72
      %p75 = scmp.ne.s32.totalorder %s60, %s74
      %p76 = scmp.eq.s32.totalorder %s15, 0
      %p77 = por %p75, %p76
      %s79 = sadd.s32 %s78, 1
      %p82 = scmp.eq.s32.totalorder %s9, 1
      %p83 = scmp.ne.s32.totalorder %s78, %s80
      %p84 = scmp.eq.s32.totalorder %s9, 0
      %p85 = por %p83, %p84
      %p86 = scmp.ne.s32.totalorder %s78, %s80
      %p87 = scmp.eq.s32.totalorder %s14, 1
      %p88 = por %p86, %p87
      %p89 = scmp.ne.s32.totalorder %s80, %s81
      %p90 = scmp.eq.s32.totalorder %s14, 0
      %p91 = por %p89, %p90
      %p92 = scmp.ne.s32.totalorder %s80, %s81
      %p93 = scmp.eq.s32.totalorder %s15, 1
      %p94 = por %p92, %p93
      %p96 = scmp.ne.s32.totalorder %s81, %s95
      %p97 = scmp.eq.s32.totalorder %s15, 0
      %p98 = por %p96, %p97
      %s99 = ssub.s32 %s16, %s28
      %s100 = ssub.s32 %s17, %s24
      %s101 = sor.u32 %s99, %s100
      %p102 = scmp.eq.s32.totalorder %s101, 0
      %s104 = sadd.s32 %s103, 1
      %s105 = scalar_select %p102, %s103, %s104
      %p108 = pneg %p102
      %p109 = scmp.eq.s32.totalorder %s9, 1
      %p110 = por %p108, %p109
      %p111 = scmp.ne.s32.totalorder %s103, %s106
      %p112 = scmp.eq.s32.totalorder %s9, 0
      %p113 = por %p111, %p112
      %p114 = scmp.ne.s32.totalorder %s103, %s106
      %p115 = scmp.eq.s32.totalorder %s14, 1
      %p116 = por %p114, %p115
      %p117 = scmp.ne.s32.totalorder %s106, %s107
      %p118 = scmp.eq.s32.totalorder %s14, 0
      %p119 = por %p117, %p118
      %p120 = scmp.ne.s32.totalorder %s106, %s107
      %p121 = scmp.eq.s32.totalorder %s15, 1
      %p122 = por %p120, %p121
      %p124 = scmp.ne.s32.totalorder %s107, %s123
      %p125 = scmp.eq.s32.totalorder %s15, 0
      %p126 = por %p124, %p125
      %p127 = scmp.le.s32.totalorder 1, %s9
      %p128 = scmp.lt.s32.totalorder %s9, 3
      %p129 = pnand %p127, %p128
      %p130 = pneg %p129
      // Predicated region
      $region9: #{conv1x1_pad1_leaky.1} parent=5 // pred_check
        _
      $region10: #{conv1x1_pad1_leaky.1} parent=5 // pred_check_branch
        %132 = sbr.rel (%p129) target = $region12
      $region11: #{conv1x1_pad1_leaky.1} parent=5 // pred_region
        %s133 = ssub.s32 %s9, 1
        // Predicated region
        $region13: #{conv1x1_pad1_leaky.1} parent=11 // pred_check
          %p134 = pneg %p70
        $region14: #{conv1x1_pad1_leaky.1} parent=11 // pred_check_branch
          %136 = sbr.rel (%p134) target = $region16
        $region15: #{conv1x1_pad1_leaky.1} parent=11 // pred_region
          _
        $region16: #{conv1x1_pad1_leaky.1} parent=11 // pred_fallthru
          _
        // Predicated region
        $region17: #{conv1x1_pad1_leaky.1} parent=11 // pred_check
          %p137 = pneg %p91
        $region18: #{conv1x1_pad1_leaky.1} parent=11 // pred_check_branch
          %139 = sbr.rel (%p137) target = $region20
        $region19: #{conv1x1_pad1_leaky.1} parent=11 // pred_region
          _
        $region20: #{conv1x1_pad1_leaky.1} parent=11 // pred_fallthru
          _
      $region12: #{conv1x1_pad1_leaky.1} parent=5 // pred_fallthru
        _
      %p140 = scmp.lt.s32.totalorder %s9, 2
      // Predicated region
      $region21: #{conv1x1_pad1_leaky.1} parent=5 // pred_check
        %p141 = pneg %p140
      $region22: #{conv1x1_pad1_leaky.1} parent=5 // pred_check_branch
        %143 = sbr.rel (%p141) target = $region24
      $region23: #{conv1x1_pad1_leaky.1} parent=5 // pred_region
        // Predicated region
        $region25: #{conv1x1_pad1_leaky.1} parent=23 // pred_check
          %p144 = pneg %p43
        $region26: #{conv1x1_pad1_leaky.1} parent=23 // pred_check_branch
          %146 = sbr.rel (%p144) target = $region28
        $region27: #{conv1x1_pad1_leaky.1} parent=23 // pred_region
          %s147 = sand.u32 %s33, 1
          %s148 = sand.u32 %s33, 1
          %s149 = smul.addr %s148, 16
          %s150 = scalar_lea.vmem [#allocation2], %s149
          %s151 = smul.addr %s16, 4
          %s152 = sadd.s32 %s17, %s151
          %s153 = smul.addr %s152, 8
          %s154 = scalar_lea.vmem %s0, %s153
          // Predicated region
          $region29: #{conv1x1_pad1_leaky.1} parent=27 // pred_check
            _
          $region30: #{conv1x1_pad1_leaky.1} parent=27 // pred_check_branch
            %156 = sbr.rel (0) target = $region32
          $region31: #{conv1x1_pad1_leaky.1} parent=27 // pred_region
            // Predicated region
            $region33: #{conv1x1_pad1_leaky.1} parent=31 // pred_check
              _
            $region34: #{conv1x1_pad1_leaky.1} parent=31 // pred_check_branch
              %158 = sbr.rel (0) target = $region36
            $region35: #{conv1x1_pad1_leaky.1} parent=31 // pred_region
              // Predicated region
              $region48: #{conv1x1_pad1_leaky.1} parent=35 // pred_check
                _
              $region49: #{conv1x1_pad1_leaky.1} parent=35 // pred_check_branch
                %175 = sbr.rel (0) target = $region51
              $region50: #{conv1x1_pad1_leaky.1} parent=35 // pred_region
                loop: start=0, step=1, limit=1
                $region52: #{conv1x1_pad1_leaky.1} parent=50 // loop_pre_header
                  _
                $region53: #{conv1x1_pad1_leaky.1} parent=50 // loop_header
                  %s177 = sphi 0, %s181
                  %p178 = scmp.ge.s32.totalorder %s177, 1
                  %s182 = sphi %s154, %s154
                  %s183 = sphi %s150, %s150
                $region54: #{conv1x1_pad1_leaky.1} parent=50 // loop_header_branch
                  %180 = sbr.rel (%p178) target = $region58
                $region55: #{conv1x1_pad1_leaky.1} parent=50 // loop_body
                  %v184 = vld [vmem:[%s182] sm:$0xff]
                  %185 = vst [vmem:[%s183] sm:$0xff] %v184
                  %v186 = vld [vmem:[%s182 + $0x10] sm:$0xff]
                  %187 = vst [vmem:[%s183 + $0x8] sm:$0xff] %v186
                $region56: #{conv1x1_pad1_leaky.1} parent=50 // loop_footer
                  %s181 = sadd.s32 1, %s177
                $region57: #{conv1x1_pad1_leaky.1} parent=50 // loop_footer_branch
                  %176 = sbr.rel target = $region53
                $region58: #{conv1x1_pad1_leaky.1} parent=50 // loop_exit
                  _
              $region51: #{conv1x1_pad1_leaky.1} parent=35 // pred_fallthru
                _
              // Predicated region
              $region59: #{conv1x1_pad1_leaky.1} parent=35 // pred_check
                _
              $region60: #{conv1x1_pad1_leaky.1} parent=35 // pred_check_branch
                %189 = sbr.rel target = $region62
              $region61: #{conv1x1_pad1_leaky.1} parent=35 // pred_region
                _
              $region62: #{conv1x1_pad1_leaky.1} parent=35 // pred_fallthru
                _
            $region36: #{conv1x1_pad1_leaky.1} parent=31 // pred_fallthru
              _
            // Predicated region
            $region37: #{conv1x1_pad1_leaky.1} parent=31 // pred_check
              _
            $region38: #{conv1x1_pad1_leaky.1} parent=31 // pred_check_branch
              %160 = sbr.rel target = $region40
            $region39: #{conv1x1_pad1_leaky.1} parent=31 // pred_region
              loop: start=0, step=1, limit=1
              $region41: #{conv1x1_pad1_leaky.1} parent=39 // loop_pre_header
                _
              $region42: #{conv1x1_pad1_leaky.1} parent=39 // loop_header
                %s163 = sphi 0, %s167
                %p164 = scmp.ge.s32.totalorder %s163, 1
                %s168 = sphi %s154, %s154
                %s169 = sphi %s150, %s150
              $region43: #{conv1x1_pad1_leaky.1} parent=39 // loop_header_branch
                %166 = sbr.rel (%p164) target = $region47
              $region44: #{conv1x1_pad1_leaky.1} parent=39 // loop_body
                %v170 = vld [vmem:[%s168] sm:$0xff]
                %171 = vst [vmem:[%s169] sm:$0xff] %v170
                %v172 = vld [vmem:[%s168 + $0x10] sm:$0xff]
                %173 = vst [vmem:[%s169 + $0x8] sm:$0xff] %v172
              $region45: #{conv1x1_pad1_leaky.1} parent=39 // loop_footer
                %s167 = sadd.s32 1, %s163
              $region46: #{conv1x1_pad1_leaky.1} parent=39 // loop_footer_branch
                %162 = sbr.rel target = $region42
              $region47: #{conv1x1_pad1_leaky.1} parent=39 // loop_exit
                _
            $region40: #{conv1x1_pad1_leaky.1} parent=31 // pred_fallthru
              _
          $region32: #{conv1x1_pad1_leaky.1} parent=27 // pred_fallthru
            _
          %190 = vnop
        $region28: #{conv1x1_pad1_leaky.1} parent=23 // pred_fallthru
          _
      $region24: #{conv1x1_pad1_leaky.1} parent=5 // pred_fallthru
        _
      %p191 = scmp.le.s32.totalorder 1, %s9
      %p192 = scmp.lt.s32.totalorder %s9, 3
      %p193 = pnand %p191, %p192
      %p194 = pneg %p193
      // Predicated region
      $region63: #{conv1x1_pad1_leaky.1} parent=5 // pred_check
        _
      $region64: #{conv1x1_pad1_leaky.1} parent=5 // pred_check_branch
        %196 = sbr.rel (%p193) target = $region66
      $region65: #{conv1x1_pad1_leaky.1} parent=5 // pred_region
        %s197 = ssub.s32 %s9, 1
        %s198 = sand.u32 %s36, 1
        %s199 = sand.u32 %s36, 1
        %s200 = smul.addr %s199, 16
        %s201 = scalar_lea.vmem [#allocation2], %s200
        // Predicated region
        $region67: #{conv1x1_pad1_leaky.1} parent=65 // pred_check
          %p202 = pneg %p49
        $region68: #{conv1x1_pad1_leaky.1} parent=65 // pred_check_branch
          %204 = sbr.rel (%p202) target = $region70
        $region69: #{conv1x1_pad1_leaky.1} parent=65 // pred_region
          _
        $region70: #{conv1x1_pad1_leaky.1} parent=65 // pred_fallthru
          _
        %s205 = sand.u32 %s36, 1
        %s206 = sand.u32 %s36, 1
        %s207 = smul.addr %s206, 16
        %s208 = scalar_lea.vmem [#allocation2], %s207
        %p209 = pneg %p49
        %p210 = pneg %p46
        %p211 = pneg %p70
        %p212 = pneg %p67
        %p213 = pneg %p91
        %p214 = pneg %p88
        %p215 = pneg %p119
        %p216 = pneg %p116
        %p217 = scmp.lt.s32.totalorder %s18, 0
        %s218 = scalar_select %p217, %s18, 0
        %p219 = scmp.lt.s32.totalorder %s19, 1
        %s220 = scalar_select %p219, %s19, 1
        %s221 = smul.addr %s218, 2
        %s222 = sadd.s32 %s220, %s221
        %s223 = smul.addr %s222, 8
        %s224 = scalar_lea.vmem %s3, %s223
        %p225 = scmp.lt.s32.totalorder %s18, 0
        %s226 = scalar_select %p225, %s18, 0
        %p227 = scmp.lt.s32.totalorder %s19, 1
        %s228 = scalar_select %p227, %s19, 1
        %s229 = smul.addr %s226, 2
        %s230 = sadd.s32 %s228, %s229
        %s231 = smul.addr %s230, 8
        %s232 = scalar_lea.vmem %s3, %s231
        %v234 = vld [vmem:[%s201] sm:$0xff]
        %v235 = vld [vmem:[%s201 + $0x8] sm:$0xff]
        %v236 = vpack.c.bf16 %v235, %v234
        %v237 = vld [vmem:[%s1] sm:$0xff]
        %v238 = vpack.c.bf16 %v237, %v237
        %v239 = vld [vmem:[%s2] sm:$0xff]
        %241 = vset.pattern.permute.xlu0 0
        %242 = vperm.xlu0 %241, %v239
        %v243 = vpop.permute.xlu0 %242
        %vm245 = vcmask 130048
        %v247 = vsel %vm245, %v238, 0
        %249 = vmatprep.subr.bf16.mxu0 0
        %250 = vmatpush1.bf16.msra.mxu0 %v236
        %251 = vmatprep.subr.bf16.mxu0 0
        %252 = vmatpush1.bf16.msra.mxu0 0
        %253 = vmatprep.subr.bf16.mxu0 0
        %254 = vmatpush1.bf16.msra.mxu0 0
        %255 = vmatprep.subr.bf16.mxu0 0
        %256 = vmatpush1.bf16.msra.mxu0 0
        %257 = vmatprep.subr.bf16.mxu0 0
        %258 = vmatpush1.bf16.msra.mxu0 0
        %259 = vmatprep.subr.bf16.mxu0 0
        %260 = vmatpush1.bf16.msra.mxu0 0
        %261 = vmatprep.subr.bf16.mxu0 0
        %262 = vmatpush1.bf16.msra.mxu0 0
        %263 = vmatprep.subr.bf16.mxu0 0
        %264 = vmatpush1.bf16.msra.mxu0 0
        %265 = vmatprep.subr.bf16.mxu0 0
        %266 = vmatpush1.bf16.msra.mxu0 0
        %267 = vmatprep.subr.bf16.mxu0 0
        %268 = vmatpush1.bf16.msra.mxu0 0
        %269 = vmatprep.subr.bf16.mxu0 0
        %270 = vmatpush1.bf16.msra.mxu0 0
        %271 = vmatprep.subr.bf16.mxu0 0
        %272 = vmatpush1.bf16.msra.mxu0 0
        %273 = vmatprep.subr.bf16.mxu0 0
        %274 = vmatpush1.bf16.msra.mxu0 0
        %275 = vmatprep.subr.bf16.mxu0 0
        %276 = vmatpush1.bf16.msra.mxu0 0
        %277 = vmatprep.subr.bf16.mxu0 0
        %278 = vmatpush1.bf16.msra.mxu0 0
        %279 = vmatprep.subr.bf16.mxu0 0
        %280 = vmatpush1.bf16.msra.mxu0 0
        %281 = vmatprep.mubr.bf16.mxu0 0
        %282 = vmatmul.mubr.bf16.gmra.mrb[0].mxu0 %v247
        %v283 = vpop.f32.mrb[0].mxu0
        %v284 = vadd.f32 %v243, %v283
        %v285 = vpop.f32.mrb[0].mxu0
        %v286 = vpop.f32.mrb[0].mxu0
        %v287 = vpop.f32.mrb[0].mxu0
        %288 = vdwg.mxu0
        %v289 = vmul.f32 %v284, 0.5
        %v290 = vmax.f32 %v284, %v289
        %291 = vst [vmem:[%s232] sm:$0xff] %v290
        %p292 = scmp.lt.s32.totalorder %s18, 0
        %s293 = scalar_select %p292, %s18, 0
        %p294 = scmp.lt.s32.totalorder %s19, 1
        %s295 = scalar_select %p294, %s19, 1
        %s296 = smul.addr %s293, 2
        %s297 = sadd.s32 %s295, %s296
        %s298 = smul.addr %s297, 8
        %s299 = scalar_lea.vmem %s3, %s298
        // Predicated region
        $region71: #{conv1x1_pad1_leaky.1} parent=65 // pred_check
          %p300 = pneg %p116
        $region72: #{conv1x1_pad1_leaky.1} parent=65 // pred_check_branch
          %302 = sbr.rel (%p300) target = $region74
        $region73: #{conv1x1_pad1_leaky.1} parent=65 // pred_region
          _
        $region74: #{conv1x1_pad1_leaky.1} parent=65 // pred_fallthru
          _
      $region66: #{conv1x1_pad1_leaky.1} parent=5 // pred_fallthru
        _
      %p303 = scmp.le.s32.totalorder 2, %s9
      // Predicated region
      $region75: #{conv1x1_pad1_leaky.1} parent=5 // pred_check
        %p304 = pneg %p303
      $region76: #{conv1x1_pad1_leaky.1} parent=5 // pred_check_branch
        %306 = sbr.rel (%p304) target = $region78
      $region77: #{conv1x1_pad1_leaky.1} parent=5 // pred_region
        %s307 = ssub.s32 %s9, 2
        // Predicated region
        $region79: #{conv1x1_pad1_leaky.1} parent=77 // pred_check
          %p308 = pneg %p122
        $region80: #{conv1x1_pad1_leaky.1} parent=77 // pred_check_branch
          %310 = sbr.rel (%p308) target = $region82
        $region81: #{conv1x1_pad1_leaky.1} parent=77 // pred_region
          %p311 = scmp.lt.s32.totalorder %s20, 0
          %s312 = scalar_select %p311, %s20, 0
          %p313 = scmp.lt.s32.totalorder %s21, 1
          %s314 = scalar_select %p313, %s21, 1
          %s315 = smul.addr %s312, 2
          %s316 = sadd.s32 %s314, %s315
          %s317 = smul.addr %s316, 8
          %s318 = scalar_lea.vmem %s3, %s317
        $region82: #{conv1x1_pad1_leaky.1} parent=77 // pred_fallthru
          _
      $region78: #{conv1x1_pad1_leaky.1} parent=5 // pred_fallthru
        _
    $region6: #{conv1x1_pad1_leaky.1} parent=1 // loop_footer
      %s13 = sadd.s32 1, %s9
    $region7: #{conv1x1_pad1_leaky.1} parent=1 // loop_footer_branch
      %8 = sbr.rel target = $region3
    $region8: #{conv1x1_pad1_leaky.1} parent=1 // loop_exit
      _

</llo_original>
